<compile_context>
chip_gen: v5e
topology: v5e:2x2
jax: 0.10.0
libtpu: 0.0.40
codegen_flags: <defaults>
</compile_context>

<pallas_src>
import numpy as np

import jax
import jax.numpy as jnp
from jax.experimental import pallas as pl
from jax.experimental.pallas import tpu as pltpu


_LANES = 128
_BN_EPS = 1e-5


def _round_up(x, m):
    return ((x + m - 1) // m) * m


def _vmem_limit_bytes():
    """~75% of this generation's physical VMEM (96 MiB v5e/v6e, 48 MiB v7x)."""
    try:
        cap = int(pltpu.get_tpu_info().vmem_capacity_bytes)
        return max(32 * 1024 * 1024, (cap * 3) // 4)
    except Exception:
        return 32 * 1024 * 1024


# ----------------------------- fused Pallas kernel --------------------------

def make_fused_hot_gnn_kernel(n_gnn, n_hosc, gnn_swap_assoc, hosc_rank1,
                              embed_dim, n_edges):
    """Build the single fused kernel (layer counts / dims are trace-time static)."""
    f32 = jnp.float32
    bf16 = jnp.bfloat16
    inv_n_edges = 1.0 / float(n_edges)

    def kernel(*refs):
        it = iter(refs)
        a_ref = next(it)        # [n_nodes, n_nodes]  bf16
        l1_ref = next(it)       # [n_edges, n_edges]  bf16
        b1_ref = next(it)       # [n_nodes, n_edges]  bf16
        xn_ref = next(it)       # [n_nodes, F_n]      f32
        xe_ref = next(it)       # [n_edges, F_e]      f32
        gnn_w, gnn_b = [], []
        for _ in range(n_gnn):
            gnn_w.append(next(it))          # [in, out] bf16
            gnn_b.append(next(it))          # [1, out]  f32
        ho_w, ho_b, ho_g, ho_bt = [], [], [], []
        for _ in range(n_hosc):
            ho_w.append(next(it))           # [in, out] f32
            ho_b.append(next(it))
            ho_g.append(next(it))
            ho_bt.append(next(it))
        h2_w = next(it)                     # [embed_dim, 2] bf16  (node | hyperedge)
        nh_b = next(it)                     # [1, 1] f32
        eh_w = next(it)                     # [n_hosc, 1] bf16
        eh_b = next(it)                     # [1, 1] f32
        node_out_ref = next(it)             # [n_nodes, node_pad] f32
        edge_out_ref = next(it)             # [n_edges, edge_pad] f32

        A = a_ref[...]                      # bf16
        L1 = l1_ref[...]                    # bf16
        B1 = b1_ref[...]                    # bf16

        # -------- GNN over nodes: H stays resident across layers -----------
        H = xn_ref[...]                     # f32
        for li in range(n_gnn):
            Wt = gnn_w[li][...]                     # bf16 [in, out]
            b = gnn_b[li][...]                      # f32  [1, out]
            H_bf = H.astype(bf16)
            if gnn_swap_assoc[li]:
                # out_dim < in_dim: A @ (H @ W.T) -- fewer MXU flops.
                hw = jnp.dot(H_bf, Wt, preferred_element_type=f32)
                pre = jnp.dot(A, hw.astype(bf16), preferred_element_type=f32)
            else:
                ah = jnp.dot(A, H_bf, preferred_element_type=f32)
                pre = jnp.dot(ah.astype(bf16), Wt, preferred_element_type=f32)
            H = jnp.maximum(pre + b, 0.0)
        H_n = H                                      # [n_nodes, node_hidden[-1]]

        # -------- HoSC over edges: Z stays resident across layers ----------
        Z = xe_ref[...]                              # f32
        z_cols = []
        for li in range(n_hosc):
            Wt = ho_w[li][...]                       # [in, out] f32
            b = ho_b[li][...]
            gamma = ho_g[li][...]
            beta = ho_bt[li][...]
            if hosc_rank1[li]:
                # in_channels == 1: rank-1 linear -> VPU broadcast multiply.
                z_theta = Z * Wt + b
            else:
                z_theta = jnp.dot(Z.astype(bf16), Wt.astype(bf16),
                                  preferred_element_type=f32) + b
            z_conv = jnp.dot(L1, z_theta.astype(bf16), preferred_element_type=f32)
            # BatchNorm1d (training-mode batch stats, biased var) in ONE pass.
            mean = jnp.sum(z_conv, axis=0, keepdims=True) * inv_n_edges
            ex2 = jnp.sum(z_conv * z_conv, axis=0, keepdims=True) * inv_n_edges
            var = jnp.maximum(ex2 - mean * mean, 0.0)
            z_bn = (z_conv - mean) * jax.lax.rsqrt(var + _BN_EPS) * gamma + beta
            z_psi = jnp.maximum(z_bn, 0.0)
            Z = jnp.max(z_psi, axis=1, keepdims=True)        # [n_edges, 1]
            z_cols.append(Z)
        Z_cat = z_cols[0] if n_hosc == 1 else jnp.concatenate(z_cols, axis=1)

        # -------- lift edges -> nodes, fused heads --------------------------
        H_e = jnp.dot(B1, Z_cat.astype(bf16), preferred_element_type=f32)
        H_full = jnp.concatenate([H_n, H_e], axis=1)         # [n_nodes, embed_dim]

        # node head + hyperedge head fused into one [embed_dim, 2] matmul.
        heads = jnp.dot(H_full.astype(bf16), h2_w[...],
                        preferred_element_type=f32)          # [n_nodes, 2]
        node_prob = jax.nn.sigmoid(heads[:, 0:1] + nh_b[...])
        he_logit = heads[:, 1:2]   # hyperedge-head bias added in the wrapper

        edge_logit = jnp.dot(Z_cat.astype(bf16), eh_w[...],
                             preferred_element_type=f32) + eh_b[...]
        edge_prob = jax.nn.sigmoid(edge_logit)               # [n_edges, 1]

        # -------- lane-dense output slabs: static-offset writes --------------
        node_out_ref[...] = jnp.zeros_like(node_out_ref)
        node_out_ref[:, 0:embed_dim] = H_full
        node_out_ref[:, embed_dim:embed_dim + 1] = node_prob
        node_out_ref[:, embed_dim + 1:embed_dim + 2] = he_logit

        edge_out_ref[...] = jnp.zeros_like(edge_out_ref)
        edge_out_ref[:, 0:n_hosc] = Z_cat
        edge_out_ref[:, n_hosc:n_hosc + 1] = edge_prob

    return kernel


# ----------------------------- parameter init ------------------------------

def _linear_params(key, in_dim, out_dim):
    k_w, k_b = jax.random.split(key)
    bound = 1.0 / float(in_dim) ** 0.5
    w = jax.random.uniform(k_w, (out_dim, in_dim), jnp.float32, -bound, bound)
    b = jax.random.uniform(k_b, (1, out_dim), jnp.float32, -bound, bound)
    return {"wt": jnp.transpose(w), "b": b}   # store W.T for in-kernel matmul


def init_hot_gnn_params(key, node_features, edge_features, node_hidden, edge_hidden):
    keys = jax.random.split(key, 3 + len(node_hidden) + len(edge_hidden))
    ki = iter(keys)
    params = {}

    gnn_layers = []
    cur = node_features
    for d in node_hidden:
        gnn_layers.append(_linear_params(next(ki), cur, d))
        cur = d
    params["gnn"] = gnn_layers

    hosc_layers = []
    cur = edge_features
    for d in edge_hidden:
        layer = _linear_params(next(ki), cur, d)
        layer["gamma"] = jnp.ones((1, d), jnp.float32)
        layer["beta"] = jnp.zeros((1, d), jnp.float32)
        hosc_layers.append(layer)
        cur = 1   # HoSC layer outputs a single (max-pooled) channel
    params["hosc"] = hosc_layers

    embed_dim = node_hidden[-1] + len(edge_hidden)
    params["node_head"] = _linear_params(next(ki), embed_dim, 1)
    params["edge_head"] = _linear_params(next(ki), len(edge_hidden), 1)
    params["hyperedge_head"] = _linear_params(next(ki), embed_dim, 1)
    return params


# ----------------------------- forward pass --------------------------------

def hot_gnn_forward(params, X_n, X_e, A_tilde, L1_tilde, B1, hyperedges=None):
    f32 = jnp.float32
    bf16 = jnp.bfloat16
    n_nodes, node_features = X_n.shape
    n_edges, edge_features = X_e.shape
    n_gnn = len(params["gnn"])
    n_hosc = len(params["hosc"])
    node_hidden_last = params["gnn"][-1]["wt"].shape[1]
    embed_dim = node_hidden_last + n_hosc
    node_pad = _round_up(embed_dim + 2, _LANES)
    edge_pad = _round_up(n_hosc + 1, _LANES)

    gnn_swap = [lyr["wt"].shape[1] < lyr["wt"].shape[0] for lyr in params["gnn"]]
    hosc_rank1 = [lyr["wt"].shape[0] == 1 for lyr in params["hosc"]]

    kernel = make_fused_hot_gnn_kernel(n_gnn, n_hosc, gnn_swap, hosc_rank1,
                                       embed_dim, n_edges)

    # Fused node+hyperedge head weight: [embed_dim, 2] bf16.
    head2_wt = jnp.concatenate([params["node_head"]["wt"],
                                params["hyperedge_head"]["wt"]], axis=1).astype(bf16)

    inputs = [A_tilde.astype(bf16), L1_tilde.astype(bf16), B1.astype(bf16),
              X_n.astype(f32), X_e.astype(f32)]
    for lyr in params["gnn"]:
        inputs += [lyr["wt"].astype(bf16), lyr["b"]]
    for lyr in params["hosc"]:
        inputs += [lyr["wt"], lyr["b"], lyr["gamma"], lyr["beta"]]
    inputs += [head2_wt, params["node_head"]["b"],
               params["edge_head"]["wt"].astype(bf16), params["edge_head"]["b"]]

    # Advisory cost estimate so XLA schedules wrapper-side work around the call.
    flops = 0
    cur = node_features
    for lyr in params["gnn"]:
        out = lyr["wt"].shape[1]
        flops += 2 * n_nodes * n_nodes * min(cur, out) + 2 * n_nodes * cur * out
        cur = out
    cur = edge_features
    for lyr in params["hosc"]:
        out = lyr["wt"].shape[1]
        flops += 2 * n_edges * cur * out + 2 * n_edges * n_edges * out
        cur = 1
    flops += 2 * n_nodes * n_edges * n_hosc          # B1 @ Z_cat
    flops += 2 * n_nodes * embed_dim * 2             # fused heads
    flops += 2 * n_edges * n_hosc                    # edge head
    bytes_accessed = sum(int(np.prod(x.shape)) * x.dtype.itemsize for x in inputs)
    bytes_accessed += n_nodes * node_pad * 4 + n_edges * edge_pad * 4
    cost = pl.CostEstimate(flops=int(flops),
                           transcendentals=int(n_nodes + n_edges),
                           bytes_accessed=int(bytes_accessed))

    # No grid -> single invocation, whole arrays resident in VMEM exactly once
    # (no pipeline double-buffering of A_tilde / L1_tilde / B1).
    vmem_spec = pl.BlockSpec(memory_space=pltpu.MemorySpace.VMEM)

    node_slab, edge_slab = pl.pallas_call(
        kernel,
        out_shape=(jax.ShapeDtypeStruct((n_nodes, node_pad), f32),
                   jax.ShapeDtypeStruct((n_edges, edge_pad), f32)),
        in_specs=[vmem_spec] * len(inputs),
        out_specs=(vmem_spec, vmem_spec),
        compiler_params=pltpu.CompilerParams(
            vmem_limit_bytes=_vmem_limit_bytes()),
        cost_estimate=cost,
    )(*inputs)

    H_full = node_slab[:, :embed_dim]                 # node_embedding
    node_prob = node_slab[:, embed_dim]               # [n_nodes]
    he_logit = node_slab[:, embed_dim + 1]            # per-node hyperedge logit
    edge_prob = edge_slab[:, n_hosc]                  # [n_edges]

    if hyperedges is not None:
        # sigmoid(W @ mean(H[idx]) + b) == sigmoid(mean((H @ W)[idx]) + b):
        # only a padded/masked segment-mean over per-node logits runs here.
        # TODO(synk): for very large hyperedge counts this gather+mean could be
        # moved into a PrefetchScalarGridSpec kernel with scalar-prefetched
        # offsets; at these sizes one vectorized take() is already cheap.
        lens = np.array([int(np.asarray(h).shape[0]) for h in hyperedges],
                        dtype=np.int32)
        max_len = int(lens.max()) if lens.size and lens.max() > 0 else 1
        idx_pad = np.zeros((len(hyperedges), max_len), dtype=np.int32)
        mask = np.zeros((len(hyperedges), max_len), dtype=np.float32)
        for r, h in enumerate(hyperedges):
            hv = np.asarray(h).astype(np.int32)
            idx_pad[r, : hv.shape[0]] = hv
            mask[r, : hv.shape[0]] = 1.0
        idx_pad_j = jnp.asarray(idx_pad)
        mask_j = jnp.asarray(mask)
        denom = jnp.maximum(jnp.asarray(lens, f32), 1.0)   # guard empty hyperedges
        gathered = jnp.take(he_logit, idx_pad_j, axis=0) * mask_j
        mean_logit = gathered.sum(axis=1) / denom
        he_bias = params["hyperedge_head"]["b"][0, 0]
        hyperedge_prob = jax.nn.sigmoid(mean_logit + he_bias)[:, None]   # [H, 1]
    else:
        hyperedge_prob = None

    return {"node_prob": node_prob,
            "edge_prob": edge_prob,
            "hyperedge_prob": hyperedge_prob,
            "node_embedding": H_full}


# ----------------------------- demo / smoke test ----------------------------

if __name__ == "__main__":
    n_nodes = 16
    n_edges = 24
    node_features = 8
    edge_features = 6
    node_hidden = [32, 16]
    edge_hidden = [8, 4]

    root = jax.random.PRNGKey(0)
    k_par, k_xn, k_xe, k_a, k_l, k_b = jax.random.split(root, 6)

    params = init_hot_gnn_params(k_par, node_features, edge_features,
                                 node_hidden, edge_hidden)

    X_n = jax.random.normal(k_xn, (n_nodes, node_features), jnp.float32)
    X_e = jax.random.normal(k_xe, (n_edges, edge_features), jnp.float32)
    A_tilde = jax.random.uniform(k_a, (n_nodes, n_nodes), jnp.float32)
    L1_tilde = jax.random.uniform(k_l, (n_edges, n_edges), jnp.float32)
    B1 = jax.random.uniform(k_b, (n_nodes, n_edges), jnp.float32)

    hyperedges = [jnp.array([0, 1, 2], dtype=jnp.int32),
                  jnp.array([3, 4, 5, 6], dtype=jnp.int32),
                  jnp.array([7, 8], dtype=jnp.int32)]

    out = hot_gnn_forward(params, X_n, X_e, A_tilde, L1_tilde, B1, hyperedges)

    jax.block_until_ready(out["node_prob"])
    jax.block_until_ready(out["edge_prob"])
    jax.block_until_ready(out["hyperedge_prob"])
    jax.block_until_ready(out["node_embedding"])

    assert out["node_prob"].shape == (n_nodes,)
    assert out["edge_prob"].shape == (n_edges,)
    assert out["hyperedge_prob"].shape == (len(hyperedges), 1)
    assert out["node_embedding"].shape == (n_nodes, node_hidden[-1] + len(edge_hidden))
    assert bool(jnp.all(jnp.isfinite(out["node_embedding"])))
    assert bool(jnp.all((out["node_prob"] >= 0) & (out["node_prob"] <= 1)))
    assert bool(jnp.all((out["edge_prob"] >= 0) & (out["edge_prob"] <= 1)))
    assert bool(jnp.all((out["hyperedge_prob"] >= 0) & (out["hyperedge_prob"] <= 1)))

    print("KERNEL_OK")
</pallas_src>

<mosaic_0001>
module attributes {stable_mosaic.version = 11 : i64} {
  func.func @kernel(%arg0: memref<16x16xbf16, #tpu.memory_space<vmem>>, %arg1: memref<24x24xbf16, #tpu.memory_space<vmem>>, %arg2: memref<16x24xbf16, #tpu.memory_space<vmem>>, %arg3: memref<16x8xf32, #tpu.memory_space<vmem>>, %arg4: memref<24x6xf32, #tpu.memory_space<vmem>>, %arg5: memref<8x32xbf16, #tpu.memory_space<vmem>>, %arg6: memref<1x32xf32, #tpu.memory_space<vmem>>, %arg7: memref<32x16xbf16, #tpu.memory_space<vmem>>, %arg8: memref<1x16xf32, #tpu.memory_space<vmem>>, %arg9: memref<6x8xf32, #tpu.memory_space<vmem>>, %arg10: memref<1x8xf32, #tpu.memory_space<vmem>>, %arg11: memref<1x8xf32, #tpu.memory_space<vmem>>, %arg12: memref<1x8xf32, #tpu.memory_space<vmem>>, %arg13: memref<1x4xf32, #tpu.memory_space<vmem>>, %arg14: memref<1x4xf32, #tpu.memory_space<vmem>>, %arg15: memref<1x4xf32, #tpu.memory_space<vmem>>, %arg16: memref<1x4xf32, #tpu.memory_space<vmem>>, %arg17: memref<18x2xbf16, #tpu.memory_space<vmem>>, %arg18: memref<1x1xf32, #tpu.memory_space<vmem>>, %arg19: memref<2x1xbf16, #tpu.memory_space<vmem>>, %arg20: memref<1x1xf32, #tpu.memory_space<vmem>>, %arg21: memref<16x128xf32, #tpu.memory_space<vmem>>, %arg22: memref<24x128xf32, #tpu.memory_space<vmem>>) attributes {dimension_semantics = [], scalar_prefetch = 0 : i64, scratch_operands = 0 : i64, tpu.core_type = #tpu.core_type<tc>} {
    %c0 = arith.constant 0 : index
    %c0_0 = arith.constant 0 : index
    %0 = vector.load %arg0[%c0, %c0_0] : memref<16x16xbf16, #tpu.memory_space<vmem>>, vector<16x16xbf16>
    %c0_1 = arith.constant 0 : index
    %c0_2 = arith.constant 0 : index
    %1 = vector.load %arg1[%c0_1, %c0_2] : memref<24x24xbf16, #tpu.memory_space<vmem>>, vector<24x24xbf16>
    %c0_3 = arith.constant 0 : index
    %c0_4 = arith.constant 0 : index
    %2 = vector.load %arg2[%c0_3, %c0_4] : memref<16x24xbf16, #tpu.memory_space<vmem>>, vector<16x24xbf16>
    %c0_5 = arith.constant 0 : index
    %c0_6 = arith.constant 0 : index
    %3 = vector.load %arg3[%c0_5, %c0_6] : memref<16x8xf32, #tpu.memory_space<vmem>>, vector<16x8xf32>
    %c0_7 = arith.constant 0 : index
    %c0_8 = arith.constant 0 : index
    %4 = vector.load %arg5[%c0_7, %c0_8] : memref<8x32xbf16, #tpu.memory_space<vmem>>, vector<8x32xbf16>
    %c0_9 = arith.constant 0 : index
    %c0_10 = arith.constant 0 : index
    %5 = vector.load %arg6[%c0_9, %c0_10] : memref<1x32xf32, #tpu.memory_space<vmem>>, vector<1x32xf32>
    %6 = arith.truncf %3 : vector<16x8xf32> to vector<16x8xbf16>
    %cst = arith.constant dense<0.000000e+00> : vector<16x8xf32>
    %7 = tpu.matmul %0, %6, %cst {dimension_numbers = #tpu.dot_dimension_numbers<[1], [0], [0], [1], [0, 0, 1, 1], [], []>} : vector<16x16xbf16>, vector<16x8xbf16>, vector<16x8xf32> -> vector<16x8xf32>
    %8 = arith.truncf %7 : vector<16x8xf32> to vector<16x8xbf16>
    %cst_11 = arith.constant dense<0.000000e+00> : vector<16x32xf32>
    %9 = tpu.matmul %8, %4, %cst_11 {dimension_numbers = #tpu.dot_dimension_numbers<[1], [0], [0], [1], [0, 0, 1, 1], [], []>} : vector<16x8xbf16>, vector<8x32xbf16>, vector<16x32xf32> -> vector<16x32xf32>
    %10 = vector.broadcast %5 : vector<1x32xf32> to vector<16x32xf32>
    %11 = arith.addf %9, %10 : vector<16x32xf32>
    %cst_12 = arith.constant 0.000000e+00 : f32
    %12 = vector.broadcast %cst_12 : f32 to vector<16x32xf32>
    %13 = arith.maximumf %11, %12 : vector<16x32xf32>
    %c0_13 = arith.constant 0 : index
    %c0_14 = arith.constant 0 : index
    %14 = vector.load %arg7[%c0_13, %c0_14] : memref<32x16xbf16, #tpu.memory_space<vmem>>, vector<32x16xbf16>
    %c0_15 = arith.constant 0 : index
    %c0_16 = arith.constant 0 : index
    %15 = vector.load %arg8[%c0_15, %c0_16] : memref<1x16xf32, #tpu.memory_space<vmem>>, vector<1x16xf32>
    %16 = arith.truncf %13 : vector<16x32xf32> to vector<16x32xbf16>
    %cst_17 = arith.constant dense<0.000000e+00> : vector<16x16xf32>
    %17 = tpu.matmul %16, %14, %cst_17 {dimension_numbers = #tpu.dot_dimension_numbers<[1], [0], [0], [1], [0, 0, 1, 1], [], []>} : vector<16x32xbf16>, vector<32x16xbf16>, vector<16x16xf32> -> vector<16x16xf32>
    %18 = arith.truncf %17 : vector<16x16xf32> to vector<16x16xbf16>
    %cst_18 = arith.constant dense<0.000000e+00> : vector<16x16xf32>
    %19 = tpu.matmul %0, %18, %cst_18 {dimension_numbers = #tpu.dot_dimension_numbers<[1], [0], [0], [1], [0, 0, 1, 1], [], []>} : vector<16x16xbf16>, vector<16x16xbf16>, vector<16x16xf32> -> vector<16x16xf32>
    %20 = vector.broadcast %15 : vector<1x16xf32> to vector<16x16xf32>
    %21 = arith.addf %19, %20 : vector<16x16xf32>
    %cst_19 = arith.constant 0.000000e+00 : f32
    %22 = vector.broadcast %cst_19 : f32 to vector<16x16xf32>
    %23 = arith.maximumf %21, %22 : vector<16x16xf32>
    %c0_20 = arith.constant 0 : index
    %c0_21 = arith.constant 0 : index
    %24 = vector.load %arg4[%c0_20, %c0_21] : memref<24x6xf32, #tpu.memory_space<vmem>>, vector<24x6xf32>
    %c0_22 = arith.constant 0 : index
    %c0_23 = arith.constant 0 : index
    %25 = vector.load %arg9[%c0_22, %c0_23] : memref<6x8xf32, #tpu.memory_space<vmem>>, vector<6x8xf32>
    %c0_24 = arith.constant 0 : index
    %c0_25 = arith.constant 0 : index
    %26 = vector.load %arg10[%c0_24, %c0_25] : memref<1x8xf32, #tpu.memory_space<vmem>>, vector<1x8xf32>
    %c0_26 = arith.constant 0 : index
    %c0_27 = arith.constant 0 : index
    %27 = vector.load %arg11[%c0_26, %c0_27] : memref<1x8xf32, #tpu.memory_space<vmem>>, vector<1x8xf32>
    %c0_28 = arith.constant 0 : index
    %c0_29 = arith.constant 0 : index
    %28 = vector.load %arg12[%c0_28, %c0_29] : memref<1x8xf32, #tpu.memory_space<vmem>>, vector<1x8xf32>
    %29 = arith.truncf %24 : vector<24x6xf32> to vector<24x6xbf16>
    %30 = arith.truncf %25 : vector<6x8xf32> to vector<6x8xbf16>
    %cst_30 = arith.constant dense<0.000000e+00> : vector<24x8xf32>
    %31 = tpu.matmul %29, %30, %cst_30 {dimension_numbers = #tpu.dot_dimension_numbers<[1], [0], [0], [1], [0, 0, 1, 1], [], []>} : vector<24x6xbf16>, vector<6x8xbf16>, vector<24x8xf32> -> vector<24x8xf32>
    %32 = vector.broadcast %26 : vector<1x8xf32> to vector<24x8xf32>
    %33 = arith.addf %31, %32 : vector<24x8xf32>
    %34 = arith.truncf %33 : vector<24x8xf32> to vector<24x8xbf16>
    %cst_31 = arith.constant dense<0.000000e+00> : vector<24x8xf32>
    %35 = tpu.matmul %1, %34, %cst_31 {dimension_numbers = #tpu.dot_dimension_numbers<[1], [0], [0], [1], [0, 0, 1, 1], [], []>} : vector<24x24xbf16>, vector<24x8xbf16>, vector<24x8xf32> -> vector<24x8xf32>
    %cst_32 = arith.constant dense<0.000000e+00> : vector<8xf32>
    %36 = vector.multi_reduction <add>, %35, %cst_32 [0] : vector<24x8xf32> to vector<8xf32>
    %37 = vector.shape_cast %36 : vector<8xf32> to vector<1x8xf32>
    %cst_33 = arith.constant 0.0416666679 : f32
    %38 = vector.broadcast %cst_33 : f32 to vector<1x8xf32>
    %39 = arith.mulf %37, %38 : vector<1x8xf32>
    %40 = arith.mulf %35, %35 : vector<24x8xf32>
    %cst_34 = arith.constant dense<0.000000e+00> : vector<8xf32>
    %41 = vector.multi_reduction <add>, %40, %cst_34 [0] : vector<24x8xf32> to vector<8xf32>
    %42 = vector.shape_cast %41 : vector<8xf32> to vector<1x8xf32>
    %cst_35 = arith.constant 0.0416666679 : f32
    %43 = vector.broadcast %cst_35 : f32 to vector<1x8xf32>
    %44 = arith.mulf %42, %43 : vector<1x8xf32>
    %45 = arith.mulf %39, %39 : vector<1x8xf32>
    %46 = arith.subf %44, %45 : vector<1x8xf32>
    %cst_36 = arith.constant 0.000000e+00 : f32
    %47 = vector.broadcast %cst_36 : f32 to vector<1x8xf32>
    %48 = arith.maximumf %46, %47 : vector<1x8xf32>
    %49 = vector.broadcast %39 : vector<1x8xf32> to vector<24x8xf32>
    %50 = arith.subf %35, %49 : vector<24x8xf32>
    %cst_37 = arith.constant 9.99999974E-6 : f32
    %51 = vector.broadcast %cst_37 : f32 to vector<1x8xf32>
    %52 = arith.addf %48, %51 : vector<1x8xf32>
    %53 = math.rsqrt %52 : vector<1x8xf32>
    %54 = vector.broadcast %53 : vector<1x8xf32> to vector<24x8xf32>
    %55 = arith.mulf %50, %54 : vector<24x8xf32>
    %56 = vector.broadcast %27 : vector<1x8xf32> to vector<24x8xf32>
    %57 = arith.mulf %55, %56 : vector<24x8xf32>
    %58 = vector.broadcast %28 : vector<1x8xf32> to vector<24x8xf32>
    %59 = arith.addf %57, %58 : vector<24x8xf32>
    %cst_38 = arith.constant 0.000000e+00 : f32
    %60 = vector.broadcast %cst_38 : f32 to vector<24x8xf32>
    %61 = arith.maximumf %59, %60 : vector<24x8xf32>
    %cst_39 = arith.constant dense<0xFF800000> : vector<24xf32>
    %62 = vector.multi_reduction <maximumf>, %61, %cst_39 [1] : vector<24x8xf32> to vector<24xf32>
    %63 = vector.shape_cast %62 : vector<24xf32> to vector<24x1xf32>
    %c0_40 = arith.constant 0 : index
    %c0_41 = arith.constant 0 : index
    %64 = vector.load %arg13[%c0_40, %c0_41] : memref<1x4xf32, #tpu.memory_space<vmem>>, vector<1x4xf32>
    %c0_42 = arith.constant 0 : index
    %c0_43 = arith.constant 0 : index
    %65 = vector.load %arg14[%c0_42, %c0_43] : memref<1x4xf32, #tpu.memory_space<vmem>>, vector<1x4xf32>
    %c0_44 = arith.constant 0 : index
    %c0_45 = arith.constant 0 : index
    %66 = vector.load %arg15[%c0_44, %c0_45] : memref<1x4xf32, #tpu.memory_space<vmem>>, vector<1x4xf32>
    %c0_46 = arith.constant 0 : index
    %c0_47 = arith.constant 0 : index
    %67 = vector.load %arg16[%c0_46, %c0_47] : memref<1x4xf32, #tpu.memory_space<vmem>>, vector<1x4xf32>
    %68 = vector.broadcast %63 : vector<24x1xf32> to vector<24x4xf32>
    %69 = vector.broadcast %64 : vector<1x4xf32> to vector<24x4xf32>
    %70 = arith.mulf %68, %69 : vector<24x4xf32>
    %71 = vector.broadcast %65 : vector<1x4xf32> to vector<24x4xf32>
    %72 = arith.addf %70, %71 : vector<24x4xf32>
    %73 = arith.truncf %72 : vector<24x4xf32> to vector<24x4xbf16>
    %cst_48 = arith.constant dense<0.000000e+00> : vector<24x4xf32>
    %74 = tpu.matmul %1, %73, %cst_48 {dimension_numbers = #tpu.dot_dimension_numbers<[1], [0], [0], [1], [0, 0, 1, 1], [], []>} : vector<24x24xbf16>, vector<24x4xbf16>, vector<24x4xf32> -> vector<24x4xf32>
    %cst_49 = arith.constant dense<0.000000e+00> : vector<4xf32>
    %75 = vector.multi_reduction <add>, %74, %cst_49 [0] : vector<24x4xf32> to vector<4xf32>
    %76 = vector.shape_cast %75 : vector<4xf32> to vector<1x4xf32>
    %cst_50 = arith.constant 0.0416666679 : f32
    %77 = vector.broadcast %cst_50 : f32 to vector<1x4xf32>
    %78 = arith.mulf %76, %77 : vector<1x4xf32>
    %79 = arith.mulf %74, %74 : vector<24x4xf32>
    %cst_51 = arith.constant dense<0.000000e+00> : vector<4xf32>
    %80 = vector.multi_reduction <add>, %79, %cst_51 [0] : vector<24x4xf32> to vector<4xf32>
    %81 = vector.shape_cast %80 : vector<4xf32> to vector<1x4xf32>
    %cst_52 = arith.constant 0.0416666679 : f32
    %82 = vector.broadcast %cst_52 : f32 to vector<1x4xf32>
    %83 = arith.mulf %81, %82 : vector<1x4xf32>
    %84 = arith.mulf %78, %78 : vector<1x4xf32>
    %85 = arith.subf %83, %84 : vector<1x4xf32>
    %cst_53 = arith.constant 0.000000e+00 : f32
    %86 = vector.broadcast %cst_53 : f32 to vector<1x4xf32>
    %87 = arith.maximumf %85, %86 : vector<1x4xf32>
    %88 = vector.broadcast %78 : vector<1x4xf32> to vector<24x4xf32>
    %89 = arith.subf %74, %88 : vector<24x4xf32>
    %cst_54 = arith.constant 9.99999974E-6 : f32
    %90 = vector.broadcast %cst_54 : f32 to vector<1x4xf32>
    %91 = arith.addf %87, %90 : vector<1x4xf32>
    %92 = math.rsqrt %91 : vector<1x4xf32>
    %93 = vector.broadcast %92 : vector<1x4xf32> to vector<24x4xf32>
    %94 = arith.mulf %89, %93 : vector<24x4xf32>
    %95 = vector.broadcast %66 : vector<1x4xf32> to vector<24x4xf32>
    %96 = arith.mulf %94, %95 : vector<24x4xf32>
    %97 = vector.broadcast %67 : vector<1x4xf32> to vector<24x4xf32>
    %98 = arith.addf %96, %97 : vector<24x4xf32>
    %cst_55 = arith.constant 0.000000e+00 : f32
    %99 = vector.broadcast %cst_55 : f32 to vector<24x4xf32>
    %100 = arith.maximumf %98, %99 : vector<24x4xf32>
    %cst_56 = arith.constant dense<0xFF800000> : vector<24xf32>
    %101 = vector.multi_reduction <maximumf>, %100, %cst_56 [1] : vector<24x4xf32> to vector<24xf32>
    %102 = vector.shape_cast %101 : vector<24xf32> to vector<24x1xf32>
    %103 = tpu.concatenate %63, %102 in 1 : vector<24x1xf32>, vector<24x1xf32> -> vector<24x2xf32>
    %104 = arith.truncf %103 : vector<24x2xf32> to vector<24x2xbf16>
    %cst_57 = arith.constant dense<0.000000e+00> : vector<16x2xf32>
    %105 = tpu.matmul %2, %104, %cst_57 {dimension_numbers = #tpu.dot_dimension_numbers<[1], [0], [0], [1], [0, 0, 1, 1], [], []>} : vector<16x24xbf16>, vector<24x2xbf16>, vector<16x2xf32> -> vector<16x2xf32>
    %106 = tpu.concatenate %23, %105 in 1 : vector<16x16xf32>, vector<16x2xf32> -> vector<16x18xf32>
    %107 = arith.truncf %106 : vector<16x18xf32> to vector<16x18xbf16>
    %c0_58 = arith.constant 0 : index
    %c0_59 = arith.constant 0 : index
    %108 = vector.load %arg17[%c0_58, %c0_59] : memref<18x2xbf16, #tpu.memory_space<vmem>>, vector<18x2xbf16>
    %cst_60 = arith.constant dense<0.000000e+00> : vector<16x2xf32>
    %109 = tpu.matmul %107, %108, %cst_60 {dimension_numbers = #tpu.dot_dimension_numbers<[1], [0], [0], [1], [0, 0, 1, 1], [], []>} : vector<16x18xbf16>, vector<18x2xbf16>, vector<16x2xf32> -> vector<16x2xf32>
    %110 = vector.extract_strided_slice %109 {offsets = [0, 0], sizes = [16, 1], strides = [1, 1]} : vector<16x2xf32> to vector<16x1xf32>
    %c0_61 = arith.constant 0 : index
    %c0_62 = arith.constant 0 : index
    %111 = vector.load %arg18[%c0_61, %c0_62] : memref<1x1xf32, #tpu.memory_space<vmem>>, vector<1x1xf32>
    %112 = vector.broadcast %111 : vector<1x1xf32> to vector<16x1xf32>
    %113 = arith.addf %110, %112 : vector<16x1xf32>
    %114 = arith.negf %113 : vector<16x1xf32>
    %115 = math.exp %114 : vector<16x1xf32>
    %cst_63 = arith.constant 1.000000e+00 : f32
    %116 = vector.broadcast %cst_63 : f32 to vector<16x1xf32>
    %117 = arith.addf %116, %115 : vector<16x1xf32>
    %118 = arith.divf %116, %117 : vector<16x1xf32>
    %119 = vector.extract_strided_slice %109 {offsets = [0, 1], sizes = [16, 1], strides = [1, 1]} : vector<16x2xf32> to vector<16x1xf32>
    %120 = arith.truncf %103 : vector<24x2xf32> to vector<24x2xbf16>
    %c0_64 = arith.constant 0 : index
    %c0_65 = arith.constant 0 : index
    %121 = vector.load %arg19[%c0_64, %c0_65] : memref<2x1xbf16, #tpu.memory_space<vmem>>, vector<2x1xbf16>
    %cst_66 = arith.constant dense<0.000000e+00> : vector<24x1xf32>
    %122 = tpu.matmul %120, %121, %cst_66 {dimension_numbers = #tpu.dot_dimension_numbers<[1], [0], [0], [1], [0, 0, 1, 1], [], []>} : vector<24x2xbf16>, vector<2x1xbf16>, vector<24x1xf32> -> vector<24x1xf32>
    %c0_67 = arith.constant 0 : index
    %c0_68 = arith.constant 0 : index
    %123 = vector.load %arg20[%c0_67, %c0_68] : memref<1x1xf32, #tpu.memory_space<vmem>>, vector<1x1xf32>
    %124 = vector.broadcast %123 : vector<1x1xf32> to vector<24x1xf32>
    %125 = arith.addf %122, %124 : vector<24x1xf32>
    %126 = arith.negf %125 : vector<24x1xf32>
    %127 = math.exp %126 : vector<24x1xf32>
    %cst_69 = arith.constant 1.000000e+00 : f32
    %128 = vector.broadcast %cst_69 : f32 to vector<24x1xf32>
    %129 = arith.addf %128, %127 : vector<24x1xf32>
    %130 = arith.divf %128, %129 : vector<24x1xf32>
    %cst_70 = arith.constant 0.000000e+00 : f32
    %131 = vector.broadcast %cst_70 : f32 to vector<16x128xf32>
    %c0_71 = arith.constant 0 : index
    %c0_72 = arith.constant 0 : index
    %132 = vector.load %arg21[%c0_71, %c0_72] : memref<16x128xf32, #tpu.memory_space<vmem>>, vector<16x128xf32>
    tpu.vector_store %arg21[%c0_71, %c0_72], %131 {strides = array<i32>} : memref<16x128xf32, #tpu.memory_space<vmem>>, vector<16x128xf32>,
    %c0_73 = arith.constant 0 : index
    %c0_74 = arith.constant 0 : index
    %133 = vector.load %arg21[%c0_73, %c0_74] : memref<16x128xf32, #tpu.memory_space<vmem>>, vector<16x18xf32>
    tpu.vector_store %arg21[%c0_73, %c0_74], %106 {strides = array<i32>} : memref<16x128xf32, #tpu.memory_space<vmem>>, vector<16x18xf32>,
    %c0_75 = arith.constant 0 : index
    %c18 = arith.constant 18 : index
    %134 = vector.load %arg21[%c0_75, %c18] : memref<16x128xf32, #tpu.memory_space<vmem>>, vector<16x1xf32>
    tpu.vector_store %arg21[%c0_75, %c18], %118 {strides = array<i32>} : memref<16x128xf32, #tpu.memory_space<vmem>>, vector<16x1xf32>,
    %c0_76 = arith.constant 0 : index
    %c19 = arith.constant 19 : index
    %135 = vector.load %arg21[%c0_76, %c19] : memref<16x128xf32, #tpu.memory_space<vmem>>, vector<16x1xf32>
    tpu.vector_store %arg21[%c0_76, %c19], %119 {strides = array<i32>} : memref<16x128xf32, #tpu.memory_space<vmem>>, vector<16x1xf32>,
    %cst_77 = arith.constant 0.000000e+00 : f32
    %136 = vector.broadcast %cst_77 : f32 to vector<24x128xf32>
    %c0_78 = arith.constant 0 : index
    %c0_79 = arith.constant 0 : index
    %137 = vector.load %arg22[%c0_78, %c0_79] : memref<24x128xf32, #tpu.memory_space<vmem>>, vector<24x128xf32>
    tpu.vector_store %arg22[%c0_78, %c0_79], %136 {strides = array<i32>} : memref<24x128xf32, #tpu.memory_space<vmem>>, vector<24x128xf32>,
    %c0_80 = arith.constant 0 : index
    %c0_81 = arith.constant 0 : index
    %138 = vector.load %arg22[%c0_80, %c0_81] : memref<24x128xf32, #tpu.memory_space<vmem>>, vector<24x2xf32>
    tpu.vector_store %arg22[%c0_80, %c0_81], %103 {strides = array<i32>} : memref<24x128xf32, #tpu.memory_space<vmem>>, vector<24x2xf32>,
    %c0_82 = arith.constant 0 : index
    %c2 = arith.constant 2 : index
    %139 = vector.load %arg22[%c0_82, %c2] : memref<24x128xf32, #tpu.memory_space<vmem>>, vector<24x1xf32>
    tpu.vector_store %arg22[%c0_82, %c2], %130 {strides = array<i32>} : memref<24x128xf32, #tpu.memory_space<vmem>>, vector<24x1xf32>,
    return
  }
}

</mosaic_0001>

<llo_original>
// kernel: tpu_custom_call.1
$region0: #{tpu_custom_call.1}
  #allocation0 [shape = 'u32[]', space=smem, size = 0x4, offset = 0x4, fixed_abs, tag = 'smem constant byte address 0x4 - core index']
  #allocation1 [shape = 'u32[72,128]{1,0:T(1,128)}', space=vmem, size = 0x9000, scoped, tag = 'internal scratch']
  #allocation2 [shape = 'f32[1,1]{1,0:T(1,128)S(1)}', space=vmem, size = 0x200, scoped, tag = 'scoped memory for tpu_custom_call.1']
  #allocation3 [shape = 'f32[1,1]{1,0:T(1,128)S(1)}', space=vmem, size = 0x200, scoped, tag = 'scoped memory for tpu_custom_call.1']
  %s0 = inlined_call_operand.vmem [shape: bf16[16,16], index: 0, kind: input, shape index: {}]
  %s1 = inlined_call_operand.vmem [shape: bf16[24,24], index: 1, kind: input, shape index: {}]
  %s2 = inlined_call_operand.vmem [shape: bf16[16,24], index: 2, kind: input, shape index: {}]
  %s3 = inlined_call_operand.vmem [shape: f32[16,8], index: 3, kind: input, shape index: {}]
  %s4 = inlined_call_operand.vmem [shape: f32[24,6], index: 4, kind: input, shape index: {}]
  %s5 = inlined_call_operand.vmem [shape: bf16[8,32], index: 5, kind: input, shape index: {}]
  %s6 = inlined_call_operand.vmem [shape: f32[1,32], index: 6, kind: input, shape index: {}]
  %s7 = inlined_call_operand.vmem [shape: bf16[32,16], index: 7, kind: input, shape index: {}]
  %s8 = inlined_call_operand.vmem [shape: f32[1,16], index: 8, kind: input, shape index: {}]
  %s9 = inlined_call_operand.vmem [shape: f32[6,8], index: 9, kind: input, shape index: {}]
  %s10 = inlined_call_operand.vmem [shape: f32[1,8], index: 10, kind: input, shape index: {}]
  %s11 = inlined_call_operand.vmem [shape: f32[1,8], index: 11, kind: input, shape index: {}]
  %s12 = inlined_call_operand.vmem [shape: f32[1,8], index: 12, kind: input, shape index: {}]
  %s13 = inlined_call_operand.vmem [shape: f32[1,4], index: 13, kind: input, shape index: {}]
  %s14 = inlined_call_operand.vmem [shape: f32[1,4], index: 14, kind: input, shape index: {}]
  %s15 = inlined_call_operand.vmem [shape: f32[1,4], index: 15, kind: input, shape index: {}]
  %s16 = inlined_call_operand.vmem [shape: f32[1,4], index: 16, kind: input, shape index: {}]
  %s17 = inlined_call_operand.vmem [shape: bf16[18,2], index: 17, kind: input, shape index: {}]
  %s18 = inlined_call_operand.<no memory space> [shape: f32[1,1], index: 18, kind: input, shape index: {}]
  %s19 = inlined_call_operand.vmem [shape: bf16[2,1], index: 19, kind: input, shape index: {}]
  %s20 = inlined_call_operand.<no memory space> [shape: f32[1,1], index: 20, kind: input, shape index: {}]
  %s21 = inlined_call_operand.hbm [shape: f32[16,128], index: 21, kind: output, shape index: {0}]
  %s22 = inlined_call_operand.hbm [shape: f32[24,128], index: 22, kind: output, shape index: {1}]
  %23 = xla_tuple %s21, %s22
  %s24 = sld [smem:[#allocation0]]
  $region102: #{tpu_custom_call.1} parent=0
    _
  %s26 = ssub.s32 1, %s24
  %s27 = scalar_select 0, %s26, %s24
  %v28 = vstv %s18
  %29 = vst [vmem:[#allocation2] sm:$0x1] %v28
  %v30 = vstv %s20
  %31 = vst [vmem:[#allocation3] sm:$0x1] %v30
  $region1: #{tpu_custom_call.1} parent=0
    #allocation4 [shape = 'u8[8192]{0}', space=vmem, size = 0x2000, scoped, tag = 'output window, operand 0, single buffered']
    #allocation5 [shape = 's32[1]{0}', space=sflag, size = 0x4, scoped, tag = 'scoped memory for tpu_custom_call.1']
    #allocation6 [shape = 'u8[12288]{0}', space=vmem, size = 0x3000, scoped, tag = 'output window, operand 1, single buffered']
    #allocation7 [shape = 's32[1]{0}', space=sflag, size = 0x4, scoped, tag = 'scoped memory for tpu_custom_call.1']
    %32 = vsyncpa [#allocation5], 0
    %33 = vsyncpa [#allocation7], 0
    // Predicated region
    $region2: #{tpu_custom_call.1} parent=1 // pred_check
      _
    $region3: #{tpu_custom_call.1} parent=1 // pred_check_branch
      %35 = sbr.rel (0) target = $region5
    $region4: #{tpu_custom_call.1} parent=1 // pred_region
      _
    $region5: #{tpu_custom_call.1} parent=1 // pred_fallthru
      _
    // Predicated region
    $region6: #{tpu_custom_call.1} parent=1 // pred_check
      _
    $region7: #{tpu_custom_call.1} parent=1 // pred_check_branch
      %37 = sbr.rel (0) target = $region9
    $region8: #{tpu_custom_call.1} parent=1 // pred_region
      _
    $region9: #{tpu_custom_call.1} parent=1 // pred_fallthru
      _
    // Predicated region
    $region10: #{tpu_custom_call.1} parent=1 // pred_check
      _
    $region11: #{tpu_custom_call.1} parent=1 // pred_check_branch
      %39 = sbr.rel (0) target = $region13
    $region12: #{tpu_custom_call.1} parent=1 // pred_region
      _
    $region13: #{tpu_custom_call.1} parent=1 // pred_fallthru
      _
    // Predicated region
    $region14: #{tpu_custom_call.1} parent=1 // pred_check
      _
    $region15: #{tpu_custom_call.1} parent=1 // pred_check_branch
      %41 = sbr.rel (0) target = $region17
    $region16: #{tpu_custom_call.1} parent=1 // pred_region
      _
    $region17: #{tpu_custom_call.1} parent=1 // pred_fallthru
      _
    // Predicated region
    $region18: #{tpu_custom_call.1} parent=1 // pred_check
      _
    $region19: #{tpu_custom_call.1} parent=1 // pred_check_branch
      %43 = sbr.rel (0) target = $region21
    $region20: #{tpu_custom_call.1} parent=1 // pred_region
      _
    $region21: #{tpu_custom_call.1} parent=1 // pred_fallthru
      _
    // Predicated region
    $region22: #{tpu_custom_call.1} parent=1 // pred_check
      _
    $region23: #{tpu_custom_call.1} parent=1 // pred_check_branch
      %45 = sbr.rel (0) target = $region25
    $region24: #{tpu_custom_call.1} parent=1 // pred_region
      _
    $region25: #{tpu_custom_call.1} parent=1 // pred_fallthru
      _
    // Predicated region
    $region26: #{tpu_custom_call.1} parent=1 // pred_check
      _
    $region27: #{tpu_custom_call.1} parent=1 // pred_check_branch
      %47 = sbr.rel (0) target = $region29
    $region28: #{tpu_custom_call.1} parent=1 // pred_region
      _
    $region29: #{tpu_custom_call.1} parent=1 // pred_fallthru
      _
    // Predicated region
    $region30: #{tpu_custom_call.1} parent=1 // pred_check
      _
    $region31: #{tpu_custom_call.1} parent=1 // pred_check_branch
      %49 = sbr.rel (0) target = $region33
    $region32: #{tpu_custom_call.1} parent=1 // pred_region
      _
    $region33: #{tpu_custom_call.1} parent=1 // pred_fallthru
      _
    // Predicated region
    $region34: #{tpu_custom_call.1} parent=1 // pred_check
      _
    $region35: #{tpu_custom_call.1} parent=1 // pred_check_branch
      %51 = sbr.rel (0) target = $region37
    $region36: #{tpu_custom_call.1} parent=1 // pred_region
      _
    $region37: #{tpu_custom_call.1} parent=1 // pred_fallthru
      _
    // Predicated region
    $region38: #{tpu_custom_call.1} parent=1 // pred_check
      _
    $region39: #{tpu_custom_call.1} parent=1 // pred_check_branch
      %53 = sbr.rel (0) target = $region41
    $region40: #{tpu_custom_call.1} parent=1 // pred_region
      _
    $region41: #{tpu_custom_call.1} parent=1 // pred_fallthru
      _
    // Predicated region
    $region42: #{tpu_custom_call.1} parent=1 // pred_check
      _
    $region43: #{tpu_custom_call.1} parent=1 // pred_check_branch
      %55 = sbr.rel (0) target = $region45
    $region44: #{tpu_custom_call.1} parent=1 // pred_region
      _
    $region45: #{tpu_custom_call.1} parent=1 // pred_fallthru
      _
    // Predicated region
    $region46: #{tpu_custom_call.1} parent=1 // pred_check
      _
    $region47: #{tpu_custom_call.1} parent=1 // pred_check_branch
      %57 = sbr.rel (0) target = $region49
    $region48: #{tpu_custom_call.1} parent=1 // pred_region
      _
    $region49: #{tpu_custom_call.1} parent=1 // pred_fallthru
      _
    // Predicated region
    $region50: #{tpu_custom_call.1} parent=1 // pred_check
      _
    $region51: #{tpu_custom_call.1} parent=1 // pred_check_branch
      %59 = sbr.rel (0) target = $region53
    $region52: #{tpu_custom_call.1} parent=1 // pred_region
      _
    $region53: #{tpu_custom_call.1} parent=1 // pred_fallthru
      _
    // Predicated region
    $region54: #{tpu_custom_call.1} parent=1 // pred_check
      _
    $region55: #{tpu_custom_call.1} parent=1 // pred_check_branch
      %61 = sbr.rel (0) target = $region57
    $region56: #{tpu_custom_call.1} parent=1 // pred_region
      _
    $region57: #{tpu_custom_call.1} parent=1 // pred_fallthru
      _
    // Predicated region
    $region58: #{tpu_custom_call.1} parent=1 // pred_check
      _
    $region59: #{tpu_custom_call.1} parent=1 // pred_check_branch
      %63 = sbr.rel (0) target = $region61
    $region60: #{tpu_custom_call.1} parent=1 // pred_region
      _
    $region61: #{tpu_custom_call.1} parent=1 // pred_fallthru
      _
    // Predicated region
    $region62: #{tpu_custom_call.1} parent=1 // pred_check
      _
    $region63: #{tpu_custom_call.1} parent=1 // pred_check_branch
      %65 = sbr.rel (0) target = $region65
    $region64: #{tpu_custom_call.1} parent=1 // pred_region
      _
    $region65: #{tpu_custom_call.1} parent=1 // pred_fallthru
      _
    // Predicated region
    $region66: #{tpu_custom_call.1} parent=1 // pred_check
      _
    $region67: #{tpu_custom_call.1} parent=1 // pred_check_branch
      %67 = sbr.rel (0) target = $region69
    $region68: #{tpu_custom_call.1} parent=1 // pred_region
      _
    $region69: #{tpu_custom_call.1} parent=1 // pred_fallthru
      _
    // Predicated region
    $region70: #{tpu_custom_call.1} parent=1 // pred_check
      _
    $region71: #{tpu_custom_call.1} parent=1 // pred_check_branch
      %69 = sbr.rel (0) target = $region73
    $region72: #{tpu_custom_call.1} parent=1 // pred_region
      _
    $region73: #{tpu_custom_call.1} parent=1 // pred_fallthru
      _
    // Predicated region
    $region74: #{tpu_custom_call.1} parent=1 // pred_check
      _
    $region75: #{tpu_custom_call.1} parent=1 // pred_check_branch
      %71 = sbr.rel (0) target = $region77
    $region76: #{tpu_custom_call.1} parent=1 // pred_region
      _
    $region77: #{tpu_custom_call.1} parent=1 // pred_fallthru
      _
    // Predicated region
    $region78: #{tpu_custom_call.1} parent=1 // pred_check
      _
    $region79: #{tpu_custom_call.1} parent=1 // pred_check_branch
      %73 = sbr.rel (0) target = $region81
    $region80: #{tpu_custom_call.1} parent=1 // pred_region
      _
    $region81: #{tpu_custom_call.1} parent=1 // pred_fallthru
      _
    // Predicated region
    $region82: #{tpu_custom_call.1} parent=1 // pred_check
      _
    $region83: #{tpu_custom_call.1} parent=1 // pred_check_branch
      %75 = sbr.rel (0) target = $region85
    $region84: #{tpu_custom_call.1} parent=1 // pred_region
      _
    $region85: #{tpu_custom_call.1} parent=1 // pred_fallthru
      _
    %v77 = vld [vmem:[%s0] sm:$0xf]
    %v78 = vld [vmem:[%s0 + $0x4] sm:$0xf]
    %v79 = vld [vmem:[%s1] sm:$0xf]
    %v80 = vld [vmem:[%s1 + $0x4] sm:$0xf]
    %v81 = vld [vmem:[%s1 + $0x8] sm:$0xf]
    %v82 = vld [vmem:[%s2] sm:$0xf]
    %v83 = vld [vmem:[%s2 + $0x4] sm:$0xf]
    %v84 = vld [vmem:[%s3] sm:$0xff]
    %v85 = vld [vmem:[%s3 + $0x8] sm:$0xff]
    %v86 = vld [vmem:[%s5] sm:$0xf]
    %v87 = vld [vmem:[%s6] sm:$0x1]
    %v88 = vpack.c.bf16 %v85, %v84
    %v91 = vunpack.c.l.b16 %v77
    %v92 = vunpack.c.l.b16 %v78
    %v93 = vpack.c.b16 %v92, %v91
    %vm94 = vcmask 130048
    %v96 = vsel %vm94, %v93, 0
    %98 = vmatpush.bf16.msra.mxu0 0
    %99 = vmatpush.bf16.msra.mxu0 0
    %100 = vmatpush.bf16.msra.mxu0 0
    %101 = vmatpush.bf16.msra.mxu0 0
    %102 = vmatpush.bf16.msra.mxu0 0
    %103 = vmatpush.bf16.msra.mxu0 0
    %104 = vmatpush.bf16.msra.mxu0 0
    %105 = vmatpush.bf16.msra.mxu0 %v88
    %106 = vmatmul.bf16.gmra.mxu0 %v96
    %v107 = vpop.f32.mrf.mxu0
    %v108 = vadd.f32 0.0, %v107
    %v109 = vpop.f32.mrf.mxu0
    %v110 = vadd.f32 0.0, %v109
    %111 = vdwg.mxu0
    %v112 = vpack.c.bf16 %v110, %v108
    %v114 = vperm.slane %v87, 0
    %vm116 = vcmask 64512
    %v118 = vsel %vm116, %v112, 0
    %vm120 = vcmask 1043456
    %v122 = vsel %vm120, %v86, 0
    %124 = vmatpush.bf16.msra.mxu0 0
    %125 = vmatpush.bf16.msra.mxu0 0
    %126 = vmatpush.bf16.msra.mxu0 0
    %127 = vmatpush.bf16.msra.mxu0 0
    %128 = vmatpush.bf16.msra.mxu0 0
    %129 = vmatpush.bf16.msra.mxu0 0
    %130 = vmatpush.bf16.msra.mxu0 0
    %131 = vmatpush.bf16.msra.mxu0 %v122
    %132 = vmatmul.bf16.gmra.mxu0 %v118
    %v133 = vpop.f32.mrf.mxu0
    %v134 = vadd.f32 %v114, %v133
    %v135 = vpop.f32.mrf.mxu0
    %v136 = vadd.f32 %v114, %v135
    %137 = vdwg.mxu0
    %v138 = vmax.f32 %v134, 0.0
    %v139 = vmax.f32 %v136, 0.0
    %v140 = vld [vmem:[%s7] sm:$0xf]
    %v141 = vld [vmem:[%s7 + $0x4] sm:$0xf]
    %v142 = vld [vmem:[%s7 + $0x8] sm:$0xf]
    %v143 = vld [vmem:[%s7 + $0xc] sm:$0xf]
    %v144 = vld [vmem:[%s8] sm:$0x1]
    %v145 = vpack.c.bf16 %v139, %v138
    %v150 = vunpack.c.l.b16 %v140
    %v151 = vunpack.c.l.b16 %v141
    %v152 = vunpack.c.l.b16 %v142
    %v153 = vunpack.c.l.b16 %v143
    %v154 = vpack.c.b16 %v151, %v150
    %v155 = vpack.c.b16 %v153, %v152
    %vm158 = vcmask 261120
    %v160 = vsel %vm158, %v145, 0
    %162 = vmatpush.bf16.msra.mxu0 0
    %163 = vmatpush.bf16.msra.mxu0 0
    %164 = vmatpush.bf16.msra.mxu0 0
    %165 = vmatpush.bf16.msra.mxu0 0
    %166 = vmatpush.bf16.msra.mxu0 0
    %167 = vmatpush.bf16.msra.mxu0 0
    %168 = vmatpush.bf16.msra.mxu0 %v155
    %169 = vmatpush.bf16.msra.mxu0 %v154
    %170 = vmatmul.bf16.gmra.mxu0 %v160
    %v171 = vpop.f32.mrf.mxu0
    %v172 = vadd.f32 0.0, %v171
    %v173 = vpop.f32.mrf.mxu0
    %v174 = vadd.f32 0.0, %v173
    %175 = vdwg.mxu0
    %v176 = vpack.c.bf16 %v174, %v172
    %v178 = vperm.slane %v144, 0
    %180 = vmatpush.bf16.msra.mxu0 0
    %181 = vmatpush.bf16.msra.mxu0 0
    %182 = vmatpush.bf16.msra.mxu0 0
    %183 = vmatpush.bf16.msra.mxu0 0
    %184 = vmatpush.bf16.msra.mxu0 0
    %185 = vmatpush.bf16.msra.mxu0 0
    %186 = vmatpush.bf16.msra.mxu0 0
    %187 = vmatpush.bf16.msra.mxu0 %v176
    %188 = vmatmul.bf16.gmra.mxu0 %v96
    %v189 = vpop.f32.mrf.mxu0
    %v190 = vadd.f32 %v178, %v189
    %v191 = vpop.f32.mrf.mxu0
    %v192 = vadd.f32 %v178, %v191
    %193 = vdwg.mxu0
    %v194 = vmax.f32 %v190, 0.0
    %v195 = vmax.f32 %v192, 0.0
    %v196 = vld [vmem:[%s4] sm:$0xff]
    %v197 = vld [vmem:[%s4 + $0x8] sm:$0xff]
    %v198 = vld [vmem:[%s4 + $0x10] sm:$0xff]
    %v199 = vld [vmem:[%s9] sm:$0x3f]
    %v200 = vld [vmem:[%s10] sm:$0x1]
    %v201 = vld [vmem:[%s11] sm:$0x1]
    %v202 = vld [vmem:[%s12] sm:$0x1]
    %v203 = vpack.c.bf16 %v197, %v196
    %v204 = vpack.c.bf16 %v198, %v198
    %v205 = vpack.c.bf16 %v199, %v199
    %v207 = vperm.slane %v200, 0
    %vm209 = vcmask 48128
    %v211 = vsel %vm209, %v203, 0
    %v214 = vsel %vm209, %v204, 0
    %vm216 = vcmask 1042432
    %v218 = vsel %vm216, %v205, 0
    %220 = vmatpush.bf16.msra.mxu0 0
    %221 = vmatpush.bf16.msra.mxu0 0
    %222 = vmatpush.bf16.msra.mxu0 0
    %223 = vmatpush.bf16.msra.mxu0 0
    %224 = vmatpush.bf16.msra.mxu0 0
    %225 = vmatpush.bf16.msra.mxu0 0
    %226 = vmatpush.bf16.msra.mxu0 0
    %227 = vmatpush.bf16.msra.mxu0 %v218
    %228 = vmatmul.bf16.gmra.mxu0 %v211
    %v229 = vpop.f32.mrf.mxu0
    %v230 = vadd.f32 %v207, %v229
    %v231 = vpop.f32.mrf.mxu0
    %v232 = vadd.f32 %v207, %v231
    %233 = vmatmul.bf16.gmra.mxu0 %v214
    %v234 = vpop.f32.mrf.mxu0
    %v235 = vadd.f32 %v207, %v234
    %v236 = vpop.f32.mrf.mxu0
    %237 = vdwg.mxu0
    %v238 = vpack.c.bf16 %v232, %v230
    %v239 = vpack.c.bf16 %v235, %v235
    %v243 = vunpack.c.l.b16 %v79
    %v244 = vunpack.c.l.b16 %v80
    %v245 = vunpack.c.l.b16 %v81
    %v246 = vpack.c.b16 %v244, %v243
    %v247 = vpack.c.b16 %v245, %v245
    %vm248 = vcmask 195584
    %v250 = vsel %vm248, %v246, 0
    %v253 = vsel %vm248, %v247, 0
    %v256 = vsel %vm120, %v239, 0
    %258 = vmatpush.bf16.msra.mxu0 0
    %259 = vmatpush.bf16.msra.mxu0 0
    %260 = vmatpush.bf16.msra.mxu0 0
    %261 = vmatpush.bf16.msra.mxu0 0
    %262 = vmatpush.bf16.msra.mxu0 0
    %263 = vmatpush.bf16.msra.mxu0 0
    %264 = vmatpush.bf16.msra.mxu0 %v256
    %265 = vmatpush.bf16.msra.mxu0 %v238
    %266 = vmatmul.bf16.gmra.mxu0 %v250
    %v267 = vpop.f32.mrf.mxu0
    %v268 = vadd.f32 0.0, %v267
    %v269 = vpop.f32.mrf.mxu0
    %v270 = vadd.f32 0.0, %v269
    %271 = vmatmul.bf16.gmra.mxu0 %v253
    %v272 = vpop.f32.mrf.mxu0
    %v273 = vadd.f32 0.0, %v272
    %v274 = vpop.f32.mrf.mxu0
    %275 = vdwg.mxu0
    %v276 = vsel %vm116, %v268, 0.0
    %v277 = vsel %vm116, %v270, 0.0
    %v278 = vadd.f32 %v276, %v277
    %v279 = vsel %vm116, %v273, 0.0
    %v280 = vadd.f32 %v278, %v279
    %v281 = vrot.slane %v280, 4
    %v282 = vadd.f32 %v280, %v281
    %v283 = vrot.slane %v282, 2
    %v284 = vadd.f32 %v282, %v283
    %v285 = vrot.slane %v284, 1
    %v286 = vadd.f32 %v284, %v285
    %v287 = vmul.f32 %v286, 0.041666668
    %v288 = vmul.f32 %v268, %v268
    %v289 = vmul.f32 %v270, %v270
    %v290 = vmul.f32 %v273, %v273
    %v291 = vsel %vm116, %v288, 0.0
    %v292 = vsel %vm116, %v289, 0.0
    %v293 = vadd.f32 %v291, %v292
    %v294 = vsel %vm116, %v290, 0.0
    %v295 = vadd.f32 %v293, %v294
    %v296 = vrot.slane %v295, 4
    %v297 = vadd.f32 %v295, %v296
    %v298 = vrot.slane %v297, 2
    %v299 = vadd.f32 %v297, %v298
    %v300 = vrot.slane %v299, 1
    %v301 = vadd.f32 %v299, %v300
    %v302 = vmul.f32 %v301, 0.041666668
    %v303 = vmul.f32 %v287, %v287
    %v304 = vsub.f32 %v302, %v303
    %v305 = vmax.f32 %v304, 0.0
    %v306 = vsub.f32 %v268, %v287
    %v307 = vsub.f32 %v270, %v287
    %v308 = vsub.f32 %v273, %v287
    %v309 = vadd.f32 %v305, 1e-05
    %v310 = vrsqrt.pop %v309
    %v311 = vmul.f32 %v310, %v309
    %v312 = vmul.f32 %v311, %v310
    %v313 = vmul.f32 0.5, %v312
    %v314 = vsub.f32 1.5, %v313
    %v315 = vmul.f32 %v310, %v314
    %vm316 = vweird.f32 %v309
    %vm317 = vweird.f32 %v310
    %vm318 = vmor %vm316, %vm317
    %v319 = vsel %vm318, %v310, %v315
    %v320 = vmul.f32 %v306, %v319
    %v321 = vmul.f32 %v307, %v319
    %v322 = vmul.f32 %v308, %v319
    %v324 = vperm.slane %v201, 0
    %v326 = vmul.f32 %v320, %v324
    %v327 = vmul.f32 %v321, %v324
    %v328 = vmul.f32 %v322, %v324
    %v330 = vperm.slane %v202, 0
    %v332 = vadd.f32 %v326, %v330
    %v333 = vadd.f32 %v327, %v330
    %v334 = vadd.f32 %v328, %v330
    %v335 = vmax.f32 %v332, 0.0
    %v336 = vmax.f32 %v333, 0.0
    %v337 = vmax.f32 %v334, 0.0
    %v338 = vsel %vm116, %v335, -inf
    %339 = vmax.xlane.f32.xlu0 %v338
    %v340 = vpop.xlane.xlu0 %339
    %v341 = vsel %vm116, %v336, -inf
    %342 = vmax.xlane.f32.xlu0 %v341
    %v343 = vpop.xlane.xlu0 %342
    %v344 = vsel %vm116, %v337, -inf
    %345 = vmax.xlane.f32.xlu0 %v344
    %v346 = vpop.xlane.xlu0 %345
    %v347 = vld [vmem:[%s13] sm:$0x1]
    %v348 = vld [vmem:[%s14] sm:$0x1]
    %v349 = vld [vmem:[%s15] sm:$0x1]
    %v350 = vld [vmem:[%s16] sm:$0x1]
    %v352 = vperm.slane %v347, 0
    %v354 = vmul.f32 %v340, %v352
    %v355 = vmul.f32 %v343, %v352
    %v356 = vmul.f32 %v346, %v352
    %v358 = vperm.slane %v348, 0
    %v360 = vadd.f32 %v354, %v358
    %v361 = vadd.f32 %v355, %v358
    %v362 = vadd.f32 %v356, %v358
    %v363 = vpack.c.bf16 %v361, %v360
    %v364 = vpack.c.bf16 %v362, %v362
    %v366 = vsel %vm120, %v364, 0
    %368 = vmatpush.bf16.msra.mxu0 0
    %369 = vmatpush.bf16.msra.mxu0 0
    %370 = vmatpush.bf16.msra.mxu0 0
    %371 = vmatpush.bf16.msra.mxu0 0
    %372 = vmatpush.bf16.msra.mxu0 0
    %373 = vmatpush.bf16.msra.mxu0 0
    %374 = vmatpush.bf16.msra.mxu0 %v366
    %375 = vmatpush.bf16.msra.mxu0 %v363
    %376 = vmatmul.bf16.gmra.mxu0 %v250
    %v377 = vpop.f32.mrf.mxu0
    %v378 = vadd.f32 0.0, %v377
    %v379 = vpop.f32.mrf.mxu0
    %v380 = vadd.f32 0.0, %v379
    %381 = vmatmul.bf16.gmra.mxu0 %v253
    %v382 = vpop.f32.mrf.mxu0
    %v383 = vadd.f32 0.0, %v382
    %v384 = vpop.f32.mrf.mxu0
    %385 = vdwg.mxu0
    %vm386 = vcmask 31744
    %v387 = vsel %vm386, %v378, 0.0
    %v388 = vsel %vm386, %v380, 0.0
    %v389 = vadd.f32 %v387, %v388
    %v390 = vsel %vm386, %v383, 0.0
    %v391 = vadd.f32 %v389, %v390
    %v392 = vrot.slane %v391, 4
    %v393 = vadd.f32 %v391, %v392
    %v394 = vrot.slane %v393, 2
    %v395 = vadd.f32 %v393, %v394
    %v396 = vrot.slane %v395, 1
    %v397 = vadd.f32 %v395, %v396
    %v398 = vmul.f32 %v397, 0.041666668
    %v399 = vmul.f32 %v378, %v378
    %v400 = vmul.f32 %v380, %v380
    %v401 = vmul.f32 %v383, %v383
    %v402 = vsel %vm386, %v399, 0.0
    %v403 = vsel %vm386, %v400, 0.0
    %v404 = vadd.f32 %v402, %v403
    %v405 = vsel %vm386, %v401, 0.0
    %v406 = vadd.f32 %v404, %v405
    %v407 = vrot.slane %v406, 4
    %v408 = vadd.f32 %v406, %v407
    %v409 = vrot.slane %v408, 2
    %v410 = vadd.f32 %v408, %v409
    %v411 = vrot.slane %v410, 1
    %v412 = vadd.f32 %v410, %v411
    %v413 = vmul.f32 %v412, 0.041666668
    %v414 = vmul.f32 %v398, %v398
    %v415 = vsub.f32 %v413, %v414
    %v416 = vmax.f32 %v415, 0.0
    %v417 = vsub.f32 %v378, %v398
    %v418 = vsub.f32 %v380, %v398
    %v419 = vsub.f32 %v383, %v398
    %v420 = vadd.f32 %v416, 1e-05
    %v421 = vrsqrt.pop %v420
    %v422 = vmul.f32 %v421, %v420
    %v423 = vmul.f32 %v422, %v421
    %v424 = vmul.f32 0.5, %v423
    %v425 = vsub.f32 1.5, %v424
    %v426 = vmul.f32 %v421, %v425
    %vm427 = vweird.f32 %v420
    %vm428 = vweird.f32 %v421
    %vm429 = vmor %vm427, %vm428
    %v430 = vsel %vm429, %v421, %v426
    %v431 = vmul.f32 %v417, %v430
    %v432 = vmul.f32 %v418, %v430
    %v433 = vmul.f32 %v419, %v430
    %v435 = vperm.slane %v349, 0
    %v437 = vmul.f32 %v431, %v435
    %v438 = vmul.f32 %v432, %v435
    %v439 = vmul.f32 %v433, %v435
    %v441 = vperm.slane %v350, 0
    %v443 = vadd.f32 %v437, %v441
    %v444 = vadd.f32 %v438, %v441
    %v445 = vadd.f32 %v439, %v441
    %v446 = vmax.f32 %v443, 0.0
    %v447 = vmax.f32 %v444, 0.0
    %v448 = vmax.f32 %v445, 0.0
    %v449 = vsel %vm386, %v446, -inf
    %450 = vmax.xlane.f32.xlu0 %v449
    %v451 = vpop.xlane.xlu0 %450
    %v452 = vsel %vm386, %v447, -inf
    %453 = vmax.xlane.f32.xlu0 %v452
    %v454 = vpop.xlane.xlu0 %453
    %v455 = vsel %vm386, %v448, -inf
    %456 = vmax.xlane.f32.xlu0 %v455
    %v457 = vpop.xlane.xlu0 %456
    %vm458 = vcmask 7168
    %v459 = vsel %vm458, %v340, %v451
    %v460 = vsel %vm458, %v343, %v454
    %v461 = vsel %vm458, %v346, %v457
    %v462 = vpack.c.bf16 %v460, %v459
    %v463 = vpack.c.bf16 %v461, %v461
    %v466 = vunpack.c.l.b16 %v82
    %v467 = vunpack.c.l.b16 %v83
    %v468 = vpack.c.b16 %v467, %v466
    %v470 = vsel %vm248, %v468, 0
    %v473 = vsel %vm120, %v463, 0
    %475 = vmatpush.bf16.msra.mxu0 0
    %476 = vmatpush.bf16.msra.mxu0 0
    %477 = vmatpush.bf16.msra.mxu0 0
    %478 = vmatpush.bf16.msra.mxu0 0
    %479 = vmatpush.bf16.msra.mxu0 0
    %480 = vmatpush.bf16.msra.mxu0 0
    %481 = vmatpush.bf16.msra.mxu0 %v473
    %482 = vmatpush.bf16.msra.mxu0 %v462
    %483 = vmatmul.bf16.gmra.mxu0 %v470
    %v484 = vpop.f32.mrf.mxu0
    %v485 = vadd.f32 0.0, %v484
    %v486 = vpop.f32.mrf.mxu0
    %v487 = vadd.f32 0.0, %v486
    %488 = vdwg.mxu0
    %491 = vrot.lane.b32.xlu0 %v485, 16
    %v492 = vpop.permute.xlu0 %491
    %493 = vrot.lane.b32.xlu0 %v487, 16
    %v494 = vpop.permute.xlu0 %493
    %v497 = vsel %vm94, %v194, %v492
    %v498 = vsel %vm94, %v195, %v494
    %v499 = vpack.c.bf16 %v498, %v497
    %v500 = vld [vmem:[%s17] sm:$0xf]
    %v501 = vld [vmem:[%s17 + $0x4] sm:$0xf]
    %v502 = vld [vmem:[%s17 + $0x8] sm:$0x1]
    %v506 = vunpack.c.l.b16 %v500
    %v507 = vunpack.c.l.b16 %v501
    %v508 = vunpack.c.l.b16 %v502
    %v509 = vpack.c.b16 %v507, %v506
    %v510 = vpack.c.b16 %v508, %v508
    %vm512 = vcmask 146432
    %v514 = vsel %vm512, %v499, 0
    %vm516 = vcmask 1040384
    %v518 = vsel %vm516, %v510, 0
    %520 = vmatpush.bf16.msra.mxu0 0
    %521 = vmatpush.bf16.msra.mxu0 0
    %522 = vmatpush.bf16.msra.mxu0 0
    %523 = vmatpush.bf16.msra.mxu0 0
    %524 = vmatpush.bf16.msra.mxu0 0
    %525 = vmatpush.bf16.msra.mxu0 0
    %526 = vmatpush.bf16.msra.mxu0 %v518
    %527 = vmatpush.bf16.msra.mxu0 %v509
    %528 = vmatmul.bf16.gmra.mxu0 %v514
    %v529 = vpop.f32.mrf.mxu0
    %v530 = vadd.f32 0.0, %v529
    %v531 = vpop.f32.mrf.mxu0
    %v532 = vadd.f32 0.0, %v531
    %533 = vdwg.mxu0
    %v534 = vld [vmem:[#allocation2] sm:$0x1]
    %v536 = vperm.slane %v534, 0
    %v538 = vadd.f32 %v530, %v536
    %v539 = vadd.f32 %v532, %v536
    %v540 = vxor.u32 %v538, 2147483648
    %v541 = vxor.u32 %v539, 2147483648
    %v542 = vmul.f32 %v540, 1.442695
    %v543 = vpow.pop %v542
    %v544 = vmul.f32 %v541, 1.442695
    %v545 = vpow.pop %v544
    %v546 = vadd.f32 %v543, 1.0
    %v547 = vadd.f32 %v545, 1.0
    %v548 = vrcp.pop %v546
    %v549 = vmul.f32 %v546, %v548
    %v550 = vsub.f32 1.0, %v549
    %v551 = vmul.f32 %v548, %v550
    %v552 = vadd.f32 %v548, %v551
    %vm553 = vweird.f32 %v546
    %vm554 = vweird.f32 %v548
    %vm555 = vmor %vm553, %vm554
    %v556 = vsel %vm555, %v548, %v552
    %v557 = vand.u32 2147483647, %v546
    %vm558 = vcmp.eq.f32.partialorder %v557, 8.507059e+37
    %v559 = vand.u32 %v546, 2147483648
    %v560 = vor.u32 1.1754944e-38, %v559
    %v561 = vsel %vm558, %v560, %v556
    %v562 = vmul.f32 1.0, %v561
    %v563 = vrcp.pop %v547
    %v564 = vmul.f32 %v547, %v563
    %v565 = vsub.f32 1.0, %v564
    %v566 = vmul.f32 %v563, %v565
    %v567 = vadd.f32 %v563, %v566
    %vm568 = vweird.f32 %v547
    %vm569 = vweird.f32 %v563
    %vm570 = vmor %vm568, %vm569
    %v571 = vsel %vm570, %v563, %v567
    %v572 = vand.u32 2147483647, %v547
    %vm573 = vcmp.eq.f32.partialorder %v572, 8.507059e+37
    %v574 = vand.u32 %v547, 2147483648
    %v575 = vor.u32 1.1754944e-38, %v574
    %v576 = vsel %vm573, %v575, %v571
    %v577 = vmul.f32 1.0, %v576
    %v578 = vld [vmem:[%s19] sm:$0x1]
    %v579 = vld [vmem:[#allocation3] sm:$0x1]
    %v581 = vperm.slane %v579, 0
    %vm583 = vcmask 15360
    %v585 = vsel %vm583, %v462, 0
    %v587 = vsel %vm583, %v463, 0
    %v590 = vsel %vm516, %v578, 0
    %592 = vmatpush.bf16.msra.mxu0 0
    %593 = vmatpush.bf16.msra.mxu0 0
    %594 = vmatpush.bf16.msra.mxu0 0
    %595 = vmatpush.bf16.msra.mxu0 0
    %596 = vmatpush.bf16.msra.mxu0 0
    %597 = vmatpush.bf16.msra.mxu0 0
    %598 = vmatpush.bf16.msra.mxu0 0
    %599 = vmatpush.bf16.msra.mxu0 %v590
    %600 = vmatmul.bf16.gmra.mxu0 %v585
    %v601 = vpop.f32.mrf.mxu0
    %v602 = vadd.f32 %v581, %v601
    %v603 = vpop.f32.mrf.mxu0
    %v604 = vadd.f32 %v581, %v603
    %605 = vmatmul.bf16.gmra.mxu0 %v587
    %v606 = vpop.f32.mrf.mxu0
    %v607 = vadd.f32 %v581, %v606
    %v608 = vpop.f32.mrf.mxu0
    %609 = vdwg.mxu0
    %v610 = vxor.u32 %v602, 2147483648
    %v611 = vxor.u32 %v604, 2147483648
    %v612 = vxor.u32 %v607, 2147483648
    %v613 = vmul.f32 %v610, 1.442695
    %v614 = vpow.pop %v613
    %v615 = vmul.f32 %v611, 1.442695
    %v616 = vpow.pop %v615
    %v617 = vmul.f32 %v612, 1.442695
    %v618 = vpow.pop %v617
    %v619 = vadd.f32 %v614, 1.0
    %v620 = vadd.f32 %v616, 1.0
    %v621 = vadd.f32 %v618, 1.0
    %v622 = vrcp.pop %v619
    %v623 = vmul.f32 %v619, %v622
    %v624 = vsub.f32 1.0, %v623
    %v625 = vmul.f32 %v622, %v624
    %v626 = vadd.f32 %v622, %v625
    %vm627 = vweird.f32 %v619
    %vm628 = vweird.f32 %v622
    %vm629 = vmor %vm627, %vm628
    %v630 = vsel %vm629, %v622, %v626
    %v631 = vand.u32 2147483647, %v619
    %vm632 = vcmp.eq.f32.partialorder %v631, 8.507059e+37
    %v633 = vand.u32 %v619, 2147483648
    %v634 = vor.u32 1.1754944e-38, %v633
    %v635 = vsel %vm632, %v634, %v630
    %v636 = vmul.f32 1.0, %v635
    %v637 = vrcp.pop %v620
    %v638 = vmul.f32 %v620, %v637
    %v639 = vsub.f32 1.0, %v638
    %v640 = vmul.f32 %v637, %v639
    %v641 = vadd.f32 %v637, %v640
    %vm642 = vweird.f32 %v620
    %vm643 = vweird.f32 %v637
    %vm644 = vmor %vm642, %vm643
    %v645 = vsel %vm644, %v637, %v641
    %v646 = vand.u32 2147483647, %v620
    %vm647 = vcmp.eq.f32.partialorder %v646, 8.507059e+37
    %v648 = vand.u32 %v620, 2147483648
    %v649 = vor.u32 1.1754944e-38, %v648
    %v650 = vsel %vm647, %v649, %v645
    %v651 = vmul.f32 1.0, %v650
    %v652 = vrcp.pop %v621
    %v653 = vmul.f32 %v621, %v652
    %v654 = vsub.f32 1.0, %v653
    %v655 = vmul.f32 %v652, %v654
    %v656 = vadd.f32 %v652, %v655
    %vm657 = vweird.f32 %v621
    %vm658 = vweird.f32 %v652
    %vm659 = vmor %vm657, %vm658
    %v660 = vsel %vm659, %v652, %v656
    %v661 = vand.u32 2147483647, %v621
    %vm662 = vcmp.eq.f32.partialorder %v661, 8.507059e+37
    %v663 = vand.u32 %v621, 2147483648
    %v664 = vor.u32 1.1754944e-38, %v663
    %v665 = vsel %vm662, %v664, %v660
    %v666 = vmul.f32 1.0, %v665
    %667 = vst [vmem:[#allocation4] sm:$0xff] 0.0
    %668 = vst [vmem:[#allocation4 + $0x8] sm:$0xff] 0.0
    %669 = vst.msk [vmem:[#allocation4] sm:$0xff] %vm512, %v497
    %670 = vst.msk [vmem:[#allocation4 + $0x8] sm:$0xff] %vm512, %v498
    %673 = vrot.lane.b32.xlu0 %v562, 18
    %v674 = vpop.permute.xlu0 %673
    %675 = vrot.lane.b32.xlu0 %v577, 18
    %v676 = vpop.permute.xlu0 %675
    %vm679 = vcmask 154768
    %680 = vst.msk [vmem:[#allocation4] sm:$0xff] %vm679, %v674
    %681 = vst.msk [vmem:[#allocation4 + $0x8] sm:$0xff] %vm679, %v676
    %684 = vrot.lane.b32.xlu0 %v530, 18
    %v685 = vpop.permute.xlu0 %684
    %686 = vrot.lane.b32.xlu0 %v532, 18
    %v687 = vpop.permute.xlu0 %686
    %vm690 = vcmask 162968
    %691 = vst.msk [vmem:[#allocation4] sm:$0xff] %vm690, %v685
    %692 = vst.msk [vmem:[#allocation4 + $0x8] sm:$0xff] %vm690, %v687
    %693 = vst [vmem:[#allocation6] sm:$0xff] 0.0
    %694 = vst [vmem:[#allocation6 + $0x8] sm:$0xff] 0.0
    %695 = vst [vmem:[#allocation6 + $0x10] sm:$0xff] 0.0
    %696 = vst.msk [vmem:[#allocation6] sm:$0xff] %vm583, %v459
    %697 = vst.msk [vmem:[#allocation6 + $0x8] sm:$0xff] %vm583, %v460
    %698 = vst.msk [vmem:[#allocation6 + $0x10] sm:$0xff] %vm583, %v461
    %702 = vrot.lane.b32.xlu0 %v636, 2
    %v703 = vpop.permute.xlu0 %702
    %704 = vrot.lane.b32.xlu0 %v651, 2
    %v705 = vpop.permute.xlu0 %704
    %706 = vrot.lane.b32.xlu0 %v666, 2
    %v707 = vpop.permute.xlu0 %706
    %vm711 = vcmask 23568
    %712 = vst.msk [vmem:[#allocation6] sm:$0xff] %vm711, %v703
    %713 = vst.msk [vmem:[#allocation6 + $0x8] sm:$0xff] %vm711, %v705
    %714 = vst.msk [vmem:[#allocation6 + $0x10] sm:$0xff] %vm711, %v707
    // Predicated region
    $region86: #{tpu_custom_call.1} parent=1 // pred_check
      _
    $region87: #{tpu_custom_call.1} parent=1 // pred_check_branch
      %716 = sbr.rel (0) target = $region89
    $region88: #{tpu_custom_call.1} parent=1 // pred_region
      %718 = vsyncadd [#allocation5], 0
      %s719 = sshll.u32 [#allocation4], 4
      %s720 = int_to_ptr.vmem [resolvable:$true] %s719
      %s721 = sshll.u32 %s21, 4
      %s722 = int_to_ptr.hbm [resolvable:$true] %s721
      %727 = dma.vmem_to_hbm [thread:$0]  %s720, 256, %s722, [#allocation5], 128, 128, 8
    $region89: #{tpu_custom_call.1} parent=1 // pred_fallthru
      _
    // Predicated region
    $region90: #{tpu_custom_call.1} parent=1 // pred_check
      _
    $region91: #{tpu_custom_call.1} parent=1 // pred_check_branch
      %729 = sbr.rel (0) target = $region93
    $region92: #{tpu_custom_call.1} parent=1 // pred_region
      %731 = vsyncadd [#allocation7], 0
      %s732 = sshll.u32 [#allocation6], 4
      %s733 = int_to_ptr.vmem [resolvable:$true] %s732
      %s734 = sshll.u32 %s22, 4
      %s735 = int_to_ptr.hbm [resolvable:$true] %s734
      %740 = dma.vmem_to_hbm [thread:$0]  %s733, 384, %s735, [#allocation7], 128, 128, 8
    $region93: #{tpu_custom_call.1} parent=1 // pred_fallthru
      _
    // Predicated region
    $region94: #{tpu_custom_call.1} parent=1 // pred_check
      _
    $region95: #{tpu_custom_call.1} parent=1 // pred_check_branch
      %742 = sbr.rel (0) target = $region97
    $region96: #{tpu_custom_call.1} parent=1 // pred_region
      %744 = dma.done [#allocation5], 256
    $region97: #{tpu_custom_call.1} parent=1 // pred_fallthru
      _
    // Predicated region
    $region98: #{tpu_custom_call.1} parent=1 // pred_check
      _
    $region99: #{tpu_custom_call.1} parent=1 // pred_check_branch
      %746 = sbr.rel (0) target = $region101
    $region100: #{tpu_custom_call.1} parent=1 // pred_region
      %748 = dma.done [#allocation7], 384
    $region101: #{tpu_custom_call.1} parent=1 // pred_fallthru
      _
    %749 = vsyncpa [#allocation5], 1
    %750 = vsyncpa [#allocation7], 1

</llo_original>
